<compile_context>
chip_gen: v7x
topology: tpu7x:2x2x1
jax: 0.10.0
libtpu: 0.0.40
codegen_flags: <defaults>
</compile_context>

<pallas_src>
import functools

import jax
import jax.numpy as jnp
from jax.experimental import pallas as pl
from jax.experimental.pallas import tpu as pltpu

# TODO(synk): BaseFashionRecommender.forward_train / forward_test are
# @abstractmethod in the reference; the embedding + triplet-loss body below is
# a deterministic synthetic concretization so there is real compute to kernel.

MARGIN = 0.2


def _round_up(n, m):
    return ((n + m - 1) // m) * m


def _pick_k_tile(d_pad, tm, e, budget_bytes=12 * 1024 * 1024):
    # Largest K tile dividing d_pad whose double-buffered bf16 input blocks
    # stay under the budget.  d_pad is always a multiple of 128, so the
    # fallback never blows up VMEM.
    for t in (8192, 4096, 2048, 1024, 512, 256, 128):
        if d_pad % t == 0 and 2 * 2 * (tm * t + t * e) <= budget_bytes:
            return t
    assert d_pad % 128 == 0, "d_pad must be lane-aligned (multiple of 128)"
    return 128


def _vmem_limit_bytes(tm, tk, e):
    # Derived from the real working set (double-buffered bf16 inputs + the
    # resident f32 output block) with 2x headroom; clamped to [4 MiB, 32 MiB]
    # so it is portable across v5e/v6e (128 MiB) and v7x (64 MiB / 32 MiB
    # scoped default).
    need = 2 * 2 * (tm * tk + tk * e) + 2 * tm * e * 4 + (1 << 20)
    return int(min(max(2 * need, 4 << 20), 32 << 20))


# ---------------------------------------------------------------------------
# Kernel A (test path): (M, d_pad) bf16 @ (d_pad, E) bf16 -> (M, E) f32.
# Grid iterates over K only; the output block index is constant, so it stays
# VMEM-resident and doubles as the accumulator (no scratch).
# ---------------------------------------------------------------------------
def _embed_kernel(x_ref, w_ref, o_ref):
    @pl.when(pl.program_id(0) == 0)
    def _():
        o_ref[...] = jnp.zeros_like(o_ref)

    o_ref[...] += jnp.dot(
        x_ref[...], w_ref[...], preferred_element_type=jnp.float32
    )


def embed_pallas(x, w):
    """x: (M, d_pad) bf16, w: (d_pad, E) bf16 -> (M, E) f32. Weight read once."""
    m, d = x.shape
    _, e = w.shape
    tk = _pick_k_tile(d, m, e)
    return pl.pallas_call(
        _embed_kernel,
        out_shape=jax.ShapeDtypeStruct((m, e), jnp.float32),
        grid_spec=pltpu.PrefetchScalarGridSpec(
            num_scalar_prefetch=0,
            grid=(d // tk,),
            in_specs=[
                pl.BlockSpec((m, tk), lambda k: (0, k)),
                pl.BlockSpec((tk, e), lambda k: (k, 0)),
            ],
            out_specs=pl.BlockSpec((m, e), lambda k: (0, 0)),
        ),
        compiler_params=pltpu.CompilerParams(
            dimension_semantics=("arbitrary",),
            vmem_limit_bytes=_vmem_limit_bytes(m, tk, e),
        ),
    )(x, w)


# ---------------------------------------------------------------------------
# Kernel B (train path): fused matmul + triplet-margin-loss epilogue.
#   loss = mean_over_valid_rows( relu( |ea-ep|^2 - |ea-en|^2 + margin ) )
# computed in the last K step from the VMEM-resident embedding accumulator
# (direct squared-distance form: robust against f32 cancellation).
# ---------------------------------------------------------------------------
def _train_kernel(x_ref, w_ref, emb_ref, loss_ref, *, bp, b_valid, margin):
    k = pl.program_id(0)

    @pl.when(k == 0)
    def _():
        emb_ref[...] = jnp.zeros_like(emb_ref)

    emb_ref[...] += jnp.dot(
        x_ref[...], w_ref[...], preferred_element_type=jnp.float32
    )

    @pl.when(k == pl.num_programs(0) - 1)
    def _():
        e = emb_ref[...]                      # (3*bp, E) f32, resident
        ea = e[0 * bp:1 * bp, :]
        ep = e[1 * bp:2 * bp, :]
        en = e[2 * bp:3 * bp, :]
        d_ap = jnp.sum((ea - ep) ** 2, axis=-1, keepdims=True)   # (bp, 1)
        d_an = jnp.sum((ea - en) ** 2, axis=-1, keepdims=True)
        hinge = jnp.maximum(d_ap - d_an + margin, 0.0)
        rows = jax.lax.broadcasted_iota(jnp.int32, (bp, 1), 0)
        hinge = jnp.where(rows < b_valid, hinge, 0.0)   # mask padded rows
        loss_ref[0, 0] = jnp.sum(hinge) / jnp.float32(b_valid)


def triplet_train_pallas(stacked, w, *, bp, b_valid):
    """stacked: (3*bp, d_pad) bf16, w: (d_pad, E) bf16 -> (emb f32, loss (1,1))."""
    m, d = stacked.shape
    _, e = w.shape
    tk = _pick_k_tile(d, m, e)
    kernel = functools.partial(
        _train_kernel, bp=bp, b_valid=b_valid, margin=MARGIN
    )
    return pl.pallas_call(
        kernel,
        out_shape=(
            jax.ShapeDtypeStruct((m, e), jnp.float32),
            jax.ShapeDtypeStruct((1, 1), jnp.float32),
        ),
        grid_spec=pltpu.PrefetchScalarGridSpec(
            num_scalar_prefetch=0,
            grid=(d // tk,),
            in_specs=[
                pl.BlockSpec((m, tk), lambda k: (0, k)),
                pl.BlockSpec((tk, e), lambda k: (k, 0)),
            ],
            out_specs=[
                pl.BlockSpec((m, e), lambda k: (0, 0)),
                pl.BlockSpec((1, 1), lambda k: (0, 0),
                             memory_space=pltpu.SMEM),
            ],
        ),
        compiler_params=pltpu.CompilerParams(
            dimension_semantics=("arbitrary",),
            vmem_limit_bytes=_vmem_limit_bytes(m, tk, e),
        ),
    )(stacked, w)


# ---------------------------------------------------------------------------
# Jitted wrappers: reshape / bf16 cast / pad / concat fuse into one HBM pass
# together with the pallas_call.
# ---------------------------------------------------------------------------
def _flatten_pad_bf16(x, rows_pad, d_pad):
    b = x.shape[0]
    flat = x.reshape(b, -1).astype(jnp.bfloat16)
    return jnp.pad(flat, ((0, rows_pad - b), (0, d_pad - flat.shape[1])))


@functools.partial(jax.jit, static_argnames=("bp", "d_pad"))
def _forward_test_impl(img, w_padded, *, bp, d_pad):
    x = _flatten_pad_bf16(img, bp, d_pad)
    return embed_pallas(x, w_padded)


@functools.partial(jax.jit, static_argnames=("bp", "b_valid", "d_pad"))
def _forward_train_impl(img, pos_img, neg_img, w_padded, *, bp, b_valid, d_pad):
    stacked = jnp.concatenate(
        [_flatten_pad_bf16(img, bp, d_pad),
         _flatten_pad_bf16(pos_img, bp, d_pad),
         _flatten_pad_bf16(neg_img, bp, d_pad)],
        axis=0,
    )                                                  # (3*bp, d_pad) bf16
    _emb, loss = triplet_train_pallas(stacked, w_padded, bp=bp, b_valid=b_valid)
    return loss


# ---------------------------------------------------------------------------
# Module-style wrapper reproducing BaseFashionRecommender.forward dispatch
# ---------------------------------------------------------------------------
class FashionRecommenderPallas:
    def __init__(self, in_dim, embed_dim):
        # Deterministic synthetic parameter init (no checkpoint loading).
        key = jax.random.PRNGKey(42)
        w_f32 = (
            jax.random.normal(key, (in_dim, embed_dim), dtype=jnp.float32)
            / jnp.sqrt(jnp.float32(in_dim))
        )
        self.in_dim = in_dim
        self.embed_dim = embed_dim
        self.d_pad = _round_up(in_dim, 128)
        # bf16 MXU operands: 2x MXU throughput, half the HBM weight traffic.
        self.w = w_f32.astype(jnp.bfloat16)               # (D, E) unpadded
        self.w_padded = (
            jnp.pad(self.w, ((0, self.d_pad - in_dim), (0, 0)))
            if self.d_pad > in_dim else self.w
        )                                                  # (d_pad, E)

    def forward_test(self, imgs):
        b = imgs.shape[0]
        bp = max(16, _round_up(b, 16))        # 16-row pad: packed bf16 sublanes
        emb = _forward_test_impl(imgs, self.w_padded, bp=bp, d_pad=self.d_pad)
        return emb[:b]

    def forward_train(self, img, text, has_text, pos_img, pos_text,
                      pos_has_text, neg_img, neg_text, neg_has_text,
                      condition):
        # TODO(synk): text / has_text / condition branches are model-specific
        # in concrete mmfashion recommenders; image triplet path only here.
        b = img.shape[0]
        bp = max(16, _round_up(b, 16))
        return _forward_train_impl(img, pos_img, neg_img, self.w_padded,
                                   bp=bp, b_valid=b, d_pad=self.d_pad)

    def forward(self, img, text=None, has_text=None, pos_img=None,
                pos_text=None, pos_has_text=None, neg_img=None,
                neg_text=None, neg_has_text=None, condition=None,
                return_loss=True):
        if return_loss:
            return self.forward_train(img, text, has_text, pos_img, pos_text,
                                      pos_has_text, neg_img, neg_text,
                                      neg_has_text, condition)
        else:
            return self.forward_test(img)


if __name__ == "__main__":
    B, C, H, W = 2, 4, 16, 16          # small NCHW shapes
    D = C * H * W                      # 1024
    E = 128                            # embedding dim

    key = jax.random.PRNGKey(0)
    k1, k2, k3 = jax.random.split(key, 3)
    img = jax.random.normal(k1, (B, C, H, W), dtype=jnp.float32)
    pos_img = jax.random.normal(k2, (B, C, H, W), dtype=jnp.float32)
    neg_img = jax.random.normal(k3, (B, C, H, W), dtype=jnp.float32)

    model = FashionRecommenderPallas(D, E)

    # Training path (return_loss=True): fused matmul + triplet loss, (1, 1).
    loss = jax.block_until_ready(
        model.forward(img, pos_img=pos_img, neg_img=neg_img, return_loss=True)
    )

    # Test path (return_loss=False): image embedding, shape (B, E).
    emb = jax.block_until_ready(model.forward(img, return_loss=False))

    # Pure-JAX reference (same bf16 operands / f32 accumulation as the MXU).
    def ref_embed(x):
        xb = x.reshape(x.shape[0], -1).astype(jnp.bfloat16)
        return jax.lax.dot(xb, model.w, preferred_element_type=jnp.float32)

    ea, ep, en = ref_embed(img), ref_embed(pos_img), ref_embed(neg_img)
    d_ap = jnp.sum((ea - ep) ** 2, axis=-1)
    d_an = jnp.sum((ea - en) ** 2, axis=-1)
    ref_loss = jnp.mean(jnp.maximum(d_ap - d_an + MARGIN, 0.0))

    assert emb.shape == (B, E)
    assert loss.shape == (1, 1)
    assert jnp.allclose(emb, ea, rtol=1e-3, atol=1e-3)
    assert jnp.allclose(loss[0, 0], ref_loss, rtol=1e-3, atol=1e-3)

    print("KERNEL_OK")
</pallas_src>

<mosaic_0001>
module attributes {stable_mosaic.version = 11 : i64} {
  func.func @_train_kernel(%arg0: i32, %arg1: memref<48x1024xbf16, #tpu.memory_space<vmem>>, %arg2: memref<1024x128xbf16, #tpu.memory_space<vmem>>, %arg3: memref<48x128xf32, #tpu.memory_space<vmem>>, %arg4: memref<1x1xf32, #tpu.memory_space<smem>>) attributes {dimension_semantics = [#tpu.dimension_semantics<arbitrary>], iteration_bounds = array<i64: 1>, scalar_prefetch = 0 : i64, scratch_operands = 0 : i64, tpu.core_type = #tpu.core_type<tc>, window_params = [{transform_indices = @transform_0, window_bounds = array<i64: 48, 1024>}, {transform_indices = @transform_1, window_bounds = array<i64: 1024, 128>}, {pipeline_mode = #tpu.pipeline_mode<synchronous>, transform_indices = @transform_2, window_bounds = array<i64: 48, 128>}, {transform_indices = @transform_3, window_bounds = array<i64: 1, 1>}]} {
    %c0_i32 = arith.constant 0 : i32
    %0 = arith.cmpi eq, %arg0, %c0_i32 : i32
    %1 = arith.extui %0 : i1 to i32
    %c0_i32_0 = arith.constant 0 : i32
    %2 = arith.cmpi ne, %1, %c0_i32_0 : i32
    scf.if %2 {
      %cst_10 = arith.constant 0.000000e+00 : f32
      %12 = vector.broadcast %cst_10 : f32 to vector<48x128xf32>
      %c0_11 = arith.constant 0 : index
      %c0_12 = arith.constant 0 : index
      %13 = vector.load %arg3[%c0_11, %c0_12] : memref<48x128xf32, #tpu.memory_space<vmem>>, vector<48x128xf32>
      tpu.vector_store %arg3[%c0_11, %c0_12], %12 {strides = array<i32>} : memref<48x128xf32, #tpu.memory_space<vmem>>, vector<48x128xf32>,
    } else {
    }
    %c0 = arith.constant 0 : index
    %c0_1 = arith.constant 0 : index
    %3 = vector.load %arg3[%c0, %c0_1] : memref<48x128xf32, #tpu.memory_space<vmem>>, vector<48x128xf32>
    %c0_2 = arith.constant 0 : index
    %c0_3 = arith.constant 0 : index
    %4 = vector.load %arg1[%c0_2, %c0_3] : memref<48x1024xbf16, #tpu.memory_space<vmem>>, vector<48x1024xbf16>
    %c0_4 = arith.constant 0 : index
    %c0_5 = arith.constant 0 : index
    %5 = vector.load %arg2[%c0_4, %c0_5] : memref<1024x128xbf16, #tpu.memory_space<vmem>>, vector<1024x128xbf16>
    %cst = arith.constant dense<0.000000e+00> : vector<48x128xf32>
    %6 = tpu.matmul %4, %5, %cst {dimension_numbers = #tpu.dot_dimension_numbers<[1], [0], [0], [1], [0, 0, 1, 1], [], []>} : vector<48x1024xbf16>, vector<1024x128xbf16>, vector<48x128xf32> -> vector<48x128xf32>
    %7 = arith.addf %3, %6 : vector<48x128xf32>
    %c0_6 = arith.constant 0 : index
    %c0_7 = arith.constant 0 : index
    %8 = vector.load %arg3[%c0_6, %c0_7] : memref<48x128xf32, #tpu.memory_space<vmem>>, vector<48x128xf32>
    tpu.vector_store %arg3[%c0_6, %c0_7], %7 {strides = array<i32>} : memref<48x128xf32, #tpu.memory_space<vmem>>, vector<48x128xf32>,
    %c0_i32_8 = arith.constant 0 : i32
    %9 = arith.cmpi eq, %arg0, %c0_i32_8 : i32
    %10 = arith.extui %9 : i1 to i32
    %c0_i32_9 = arith.constant 0 : i32
    %11 = arith.cmpi ne, %10, %c0_i32_9 : i32
    scf.if %11 {
      %c0_10 = arith.constant 0 : index
      %c0_11 = arith.constant 0 : index
      %12 = vector.load %arg3[%c0_10, %c0_11] : memref<48x128xf32, #tpu.memory_space<vmem>>, vector<48x128xf32>
      %13 = vector.extract_strided_slice %12 {offsets = [0, 0], sizes = [16, 128], strides = [1, 1]} : vector<48x128xf32> to vector<16x128xf32>
      %14 = vector.extract_strided_slice %12 {offsets = [16, 0], sizes = [16, 128], strides = [1, 1]} : vector<48x128xf32> to vector<16x128xf32>
      %15 = vector.extract_strided_slice %12 {offsets = [32, 0], sizes = [16, 128], strides = [1, 1]} : vector<48x128xf32> to vector<16x128xf32>
      %16 = arith.subf %13, %14 : vector<16x128xf32>
      %17 = arith.mulf %16, %16 : vector<16x128xf32>
      %cst_12 = arith.constant dense<0.000000e+00> : vector<16xf32>
      %18 = vector.multi_reduction <add>, %17, %cst_12 [1] : vector<16x128xf32> to vector<16xf32>
      %19 = vector.shape_cast %18 : vector<16xf32> to vector<16x1xf32>
      %20 = arith.subf %13, %15 : vector<16x128xf32>
      %21 = arith.mulf %20, %20 : vector<16x128xf32>
      %cst_13 = arith.constant dense<0.000000e+00> : vector<16xf32>
      %22 = vector.multi_reduction <add>, %21, %cst_13 [1] : vector<16x128xf32> to vector<16xf32>
      %23 = vector.shape_cast %22 : vector<16xf32> to vector<16x1xf32>
      %24 = arith.subf %19, %23 : vector<16x1xf32>
      %cst_14 = arith.constant 2.000000e-01 : f32
      %25 = vector.broadcast %cst_14 : f32 to vector<16x1xf32>
      %26 = arith.addf %24, %25 : vector<16x1xf32>
      %cst_15 = arith.constant 0.000000e+00 : f32
      %27 = vector.broadcast %cst_15 : f32 to vector<16x1xf32>
      %28 = arith.maximumf %26, %27 : vector<16x1xf32>
      %29 = tpu.iota {dimensions = array<i32: 0>} : vector<16x1xi32>
      %c2_i32 = arith.constant 2 : i32
      %30 = vector.broadcast %c2_i32 : i32 to vector<16x1xi32>
      %31 = arith.cmpi slt, %29, %30 : vector<16x1xi32>
      %cst_16 = arith.constant 0.000000e+00 : f32
      %32 = vector.broadcast %cst_16 : f32 to vector<16x1xf32>
      %33 = arith.select %31, %28, %32 : vector<16x1xi1>, vector<16x1xf32>
      %34 = vector.shape_cast %33 : vector<16x1xf32> to vector<1x16x1xf32>
      %cst_17 = arith.constant dense<0.000000e+00> : vector<1xf32>
      %35 = vector.multi_reduction <add>, %34, %cst_17 [1, 2] : vector<1x16x1xf32> to vector<1xf32>
      %36 = vector.shape_cast %35 : vector<1xf32> to vector<1x1x1xf32>
      %37 = vector.extract %36[0, 0, 0] : f32 from vector<1x1x1xf32>
      %cst_18 = arith.constant 2.000000e+00 : f32
      %38 = arith.divf %37, %cst_18 : f32
      %c0_19 = arith.constant 0 : index
      %c0_20 = arith.constant 0 : index
      %39 = memref.load %arg4[%c0_19, %c0_20] : memref<1x1xf32, #tpu.memory_space<smem>>
      memref.store %38, %arg4[%c0_19, %c0_20] : memref<1x1xf32, #tpu.memory_space<smem>>
    } else {
    }
    return
  }
  func.func @transform_0(%arg0: i32) -> (i32, i32) {
    %c0_i32 = arith.constant 0 : i32
    %c0_i32_0 = arith.constant 0 : i32
    return %c0_i32, %arg0 : i32, i32
  }
  func.func @transform_1(%arg0: i32) -> (i32, i32) {
    %c0_i32 = arith.constant 0 : i32
    %c0_i32_0 = arith.constant 0 : i32
    return %arg0, %c0_i32 : i32, i32
  }
  func.func @transform_2(%arg0: i32) -> (i32, i32) {
    %c0_i32 = arith.constant 0 : i32
    %c0_i32_0 = arith.constant 0 : i32
    %c0_i32_1 = arith.constant 0 : i32
    return %c0_i32, %c0_i32_0 : i32, i32
  }
  func.func @transform_3(%arg0: i32) -> (i32, i32) {
    %c0_i32 = arith.constant 0 : i32
    %c0_i32_0 = arith.constant 0 : i32
    %c0_i32_1 = arith.constant 0 : i32
    return %c0_i32, %c0_i32_0 : i32, i32
  }
}

</mosaic_0001>

<llo_original>
// kernel: _forward_train_impl.1
$region0: #{_forward_train_impl.1}
  #allocation0 [shape = 'u32[]', space=smem, size = 0x4, offset = 0x4, fixed_abs, tag = 'smem constant byte address 0x4 - core index']
  #allocation1 [shape = 'u32[144,128]{1,0:T(1,128)}', space=vmem, size = 0x12000, scoped, tag = 'internal scratch']
  %s0 = inlined_call_operand.vmem [shape: bf16[48,1024], index: 0, kind: input, shape index: {}]
  %s1 = inlined_call_operand.vmem [shape: bf16[1024,128], index: 1, kind: input, shape index: {}]
  %s2 = inlined_call_operand.hbm [shape: f32[48,128], index: 2, kind: output, shape index: {0}]
  %s3 = inlined_call_operand.hbm [shape: f32[1,1], index: 3, kind: output, shape index: {1}]
  %4 = xla_tuple %s2, %s3
  %s5 = sld [smem:[#allocation0]]
  $region34: #{_forward_train_impl.1} parent=0
    _
  %s7 = ssub.s32 1, %s5
  %s8 = scalar_select 0, %s7, %s5
  $region1: #{_forward_train_impl.1} parent=0
    #allocation2 [shape = 'u8[24576]{0}', space=vmem, size = 0x6000, scoped, tag = 'output window, operand 0, single buffered']
    #allocation3 [shape = 's32[1]{0}', space=sflag, size = 0x4, scoped, tag = 'scoped memory for _forward_train_impl.1']
    #allocation4 [shape = 's32[1]{0}', space=sflag, size = 0x4, scoped, tag = 'scoped memory for _forward_train_impl.1']
    #allocation5 [shape = 'u8[512]{0}', space=smem, size = 0x200, scoped, tag = 'output window, operand 1, single buffered']
    %9 = vsyncpa [#allocation3], 0
    %10 = vsyncpa [#allocation4], 0
    // Predicated region
    $region2: #{_forward_train_impl.1} parent=1 // pred_check
      _
    $region3: #{_forward_train_impl.1} parent=1 // pred_check_branch
      %12 = sbr.rel (0) target = $region5
    $region4: #{_forward_train_impl.1} parent=1 // pred_region
      _
    $region5: #{_forward_train_impl.1} parent=1 // pred_fallthru
      _
    // Predicated region
    $region6: #{_forward_train_impl.1} parent=1 // pred_check
      _
    $region7: #{_forward_train_impl.1} parent=1 // pred_check_branch
      %14 = sbr.rel (0) target = $region9
    $region8: #{_forward_train_impl.1} parent=1 // pred_region
      _
    $region9: #{_forward_train_impl.1} parent=1 // pred_fallthru
      _
    %p16 = scmp.eq.s32.totalorder 0, 0
    // Predicated region
    $region10: #{_forward_train_impl.1} parent=1 // pred_check
      %p17 = pneg %p16
    $region11: #{_forward_train_impl.1} parent=1 // pred_check_branch
      %19 = sbr.rel (%p17) target = $region13
    $region12: #{_forward_train_impl.1} parent=1 // pred_region
      %20 = vst [vmem:[#allocation2] sm:$0xff] 0.0
      %21 = vst [vmem:[#allocation2 + $0x8] sm:$0xff] 0.0
      %22 = vst [vmem:[#allocation2 + $0x10] sm:$0xff] 0.0
      %23 = vst [vmem:[#allocation2 + $0x18] sm:$0xff] 0.0
      %24 = vst [vmem:[#allocation2 + $0x20] sm:$0xff] 0.0
      %25 = vst [vmem:[#allocation2 + $0x28] sm:$0xff] 0.0
    $region13: #{_forward_train_impl.1} parent=1 // pred_fallthru
      _
    %v26 = vld [vmem:[#allocation2] sm:$0xff]
    %v27 = vld [vmem:[#allocation2 + $0x8] sm:$0xff]
    %v28 = vld [vmem:[#allocation2 + $0x10] sm:$0xff]
    %v29 = vld [vmem:[#allocation2 + $0x18] sm:$0xff]
    %v30 = vld [vmem:[#allocation2 + $0x20] sm:$0xff]
    %v31 = vld [vmem:[#allocation2 + $0x28] sm:$0xff]
    %v32 = vld [vmem:[%s0] sm:$0xff]
    %v33 = vld [vmem:[%s0 + $0x8] sm:$0xff]
    %v34 = vld [vmem:[%s0 + $0x10] sm:$0xff]
    %v35 = vld [vmem:[%s0 + $0x18] sm:$0xff]
    %v36 = vld [vmem:[%s0 + $0x20] sm:$0xff]
    %v37 = vld [vmem:[%s0 + $0x28] sm:$0xff]
    %v38 = vld [vmem:[%s0 + $0x30] sm:$0xff]
    %v39 = vld [vmem:[%s0 + $0x38] sm:$0xff]
    %v40 = vld [vmem:[%s0 + $0x40] sm:$0xff]
    %v41 = vld [vmem:[%s0 + $0x48] sm:$0xff]
    %v42 = vld [vmem:[%s0 + $0x50] sm:$0xff]
    %v43 = vld [vmem:[%s0 + $0x58] sm:$0xff]
    %v44 = vld [vmem:[%s0 + $0x60] sm:$0xff]
    %v45 = vld [vmem:[%s0 + $0x68] sm:$0xff]
    %v46 = vld [vmem:[%s0 + $0x70] sm:$0xff]
    %v47 = vld [vmem:[%s0 + $0x78] sm:$0xff]
    %v48 = vld [vmem:[%s0 + $0x80] sm:$0xff]
    %v49 = vld [vmem:[%s0 + $0x88] sm:$0xff]
    %v50 = vld [vmem:[%s0 + $0x90] sm:$0xff]
    %v51 = vld [vmem:[%s0 + $0x98] sm:$0xff]
    %v52 = vld [vmem:[%s0 + $0xa0] sm:$0xff]
    %v53 = vld [vmem:[%s0 + $0xa8] sm:$0xff]
    %v54 = vld [vmem:[%s0 + $0xb0] sm:$0xff]
    %v55 = vld [vmem:[%s0 + $0xb8] sm:$0xff]
    %v56 = vld [vmem:[%s1] sm:$0xf]
    %v57 = vld [vmem:[%s1 + $0x4] sm:$0xf]
    %v58 = vld [vmem:[%s1 + $0x8] sm:$0xf]
    %v59 = vld [vmem:[%s1 + $0xc] sm:$0xf]
    %v60 = vld [vmem:[%s1 + $0x10] sm:$0xf]
    %v61 = vld [vmem:[%s1 + $0x14] sm:$0xf]
    %v62 = vld [vmem:[%s1 + $0x18] sm:$0xf]
    %v63 = vld [vmem:[%s1 + $0x1c] sm:$0xf]
    %v64 = vld [vmem:[%s1 + $0x20] sm:$0xf]
    %v65 = vld [vmem:[%s1 + $0x24] sm:$0xf]
    %v66 = vld [vmem:[%s1 + $0x28] sm:$0xf]
    %v67 = vld [vmem:[%s1 + $0x2c] sm:$0xf]
    %v68 = vld [vmem:[%s1 + $0x30] sm:$0xf]
    %v69 = vld [vmem:[%s1 + $0x34] sm:$0xf]
    %v70 = vld [vmem:[%s1 + $0x38] sm:$0xf]
    %v71 = vld [vmem:[%s1 + $0x3c] sm:$0xf]
    %v72 = vld [vmem:[%s1 + $0x40] sm:$0xf]
    %v73 = vld [vmem:[%s1 + $0x44] sm:$0xf]
    %v74 = vld [vmem:[%s1 + $0x48] sm:$0xf]
    %v75 = vld [vmem:[%s1 + $0x4c] sm:$0xf]
    %v76 = vld [vmem:[%s1 + $0x50] sm:$0xf]
    %v77 = vld [vmem:[%s1 + $0x54] sm:$0xf]
    %v78 = vld [vmem:[%s1 + $0x58] sm:$0xf]
    %v79 = vld [vmem:[%s1 + $0x5c] sm:$0xf]
    %v80 = vld [vmem:[%s1 + $0x60] sm:$0xf]
    %v81 = vld [vmem:[%s1 + $0x64] sm:$0xf]
    %v82 = vld [vmem:[%s1 + $0x68] sm:$0xf]
    %v83 = vld [vmem:[%s1 + $0x6c] sm:$0xf]
    %v84 = vld [vmem:[%s1 + $0x70] sm:$0xf]
    %v85 = vld [vmem:[%s1 + $0x74] sm:$0xf]
    %v86 = vld [vmem:[%s1 + $0x78] sm:$0xf]
    %v87 = vld [vmem:[%s1 + $0x7c] sm:$0xf]
    %v88 = vld [vmem:[%s1 + $0x80] sm:$0xf]
    %v89 = vld [vmem:[%s1 + $0x84] sm:$0xf]
    %v90 = vld [vmem:[%s1 + $0x88] sm:$0xf]
    %v91 = vld [vmem:[%s1 + $0x8c] sm:$0xf]
    %v92 = vld [vmem:[%s1 + $0x90] sm:$0xf]
    %v93 = vld [vmem:[%s1 + $0x94] sm:$0xf]
    %v94 = vld [vmem:[%s1 + $0x98] sm:$0xf]
    %v95 = vld [vmem:[%s1 + $0x9c] sm:$0xf]
    %v96 = vld [vmem:[%s1 + $0xa0] sm:$0xf]
    %v97 = vld [vmem:[%s1 + $0xa4] sm:$0xf]
    %v98 = vld [vmem:[%s1 + $0xa8] sm:$0xf]
    %v99 = vld [vmem:[%s1 + $0xac] sm:$0xf]
    %v100 = vld [vmem:[%s1 + $0xb0] sm:$0xf]
    %v101 = vld [vmem:[%s1 + $0xb4] sm:$0xf]
    %v102 = vld [vmem:[%s1 + $0xb8] sm:$0xf]
    %v103 = vld [vmem:[%s1 + $0xbc] sm:$0xf]
    %v104 = vld [vmem:[%s1 + $0xc0] sm:$0xf]
    %v105 = vld [vmem:[%s1 + $0xc4] sm:$0xf]
    %v106 = vld [vmem:[%s1 + $0xc8] sm:$0xf]
    %v107 = vld [vmem:[%s1 + $0xcc] sm:$0xf]
    %v108 = vld [vmem:[%s1 + $0xd0] sm:$0xf]
    %v109 = vld [vmem:[%s1 + $0xd4] sm:$0xf]
    %v110 = vld [vmem:[%s1 + $0xd8] sm:$0xf]
    %v111 = vld [vmem:[%s1 + $0xdc] sm:$0xf]
    %v112 = vld [vmem:[%s1 + $0xe0] sm:$0xf]
    %v113 = vld [vmem:[%s1 + $0xe4] sm:$0xf]
    %v114 = vld [vmem:[%s1 + $0xe8] sm:$0xf]
    %v115 = vld [vmem:[%s1 + $0xec] sm:$0xf]
    %v116 = vld [vmem:[%s1 + $0xf0] sm:$0xf]
    %v117 = vld [vmem:[%s1 + $0xf4] sm:$0xf]
    %v118 = vld [vmem:[%s1 + $0xf8] sm:$0xf]
    %v119 = vld [vmem:[%s1 + $0xfc] sm:$0xf]
    %v120 = vld [vmem:[%s1 + $0x100] sm:$0xf]
    %v121 = vld [vmem:[%s1 + $0x104] sm:$0xf]
    %v122 = vld [vmem:[%s1 + $0x108] sm:$0xf]
    %v123 = vld [vmem:[%s1 + $0x10c] sm:$0xf]
    %v124 = vld [vmem:[%s1 + $0x110] sm:$0xf]
    %v125 = vld [vmem:[%s1 + $0x114] sm:$0xf]
    %v126 = vld [vmem:[%s1 + $0x118] sm:$0xf]
    %v127 = vld [vmem:[%s1 + $0x11c] sm:$0xf]
    %v128 = vld [vmem:[%s1 + $0x120] sm:$0xf]
    %v129 = vld [vmem:[%s1 + $0x124] sm:$0xf]
    %v130 = vld [vmem:[%s1 + $0x128] sm:$0xf]
    %v131 = vld [vmem:[%s1 + $0x12c] sm:$0xf]
    %v132 = vld [vmem:[%s1 + $0x130] sm:$0xf]
    %v133 = vld [vmem:[%s1 + $0x134] sm:$0xf]
    %v134 = vld [vmem:[%s1 + $0x138] sm:$0xf]
    %v135 = vld [vmem:[%s1 + $0x13c] sm:$0xf]
    %v136 = vld [vmem:[%s1 + $0x140] sm:$0xf]
    %v137 = vld [vmem:[%s1 + $0x144] sm:$0xf]
    %v138 = vld [vmem:[%s1 + $0x148] sm:$0xf]
    %v139 = vld [vmem:[%s1 + $0x14c] sm:$0xf]
    %v140 = vld [vmem:[%s1 + $0x150] sm:$0xf]
    %v141 = vld [vmem:[%s1 + $0x154] sm:$0xf]
    %v142 = vld [vmem:[%s1 + $0x158] sm:$0xf]
    %v143 = vld [vmem:[%s1 + $0x15c] sm:$0xf]
    %v144 = vld [vmem:[%s1 + $0x160] sm:$0xf]
    %v145 = vld [vmem:[%s1 + $0x164] sm:$0xf]
    %v146 = vld [vmem:[%s1 + $0x168] sm:$0xf]
    %v147 = vld [vmem:[%s1 + $0x16c] sm:$0xf]
    %v148 = vld [vmem:[%s1 + $0x170] sm:$0xf]
    %v149 = vld [vmem:[%s1 + $0x174] sm:$0xf]
    %v150 = vld [vmem:[%s1 + $0x178] sm:$0xf]
    %v151 = vld [vmem:[%s1 + $0x17c] sm:$0xf]
    %v152 = vld [vmem:[%s1 + $0x180] sm:$0xf]
    %v153 = vld [vmem:[%s1 + $0x184] sm:$0xf]
    %v154 = vld [vmem:[%s1 + $0x188] sm:$0xf]
    %v155 = vld [vmem:[%s1 + $0x18c] sm:$0xf]
    %v156 = vld [vmem:[%s1 + $0x190] sm:$0xf]
    %v157 = vld [vmem:[%s1 + $0x194] sm:$0xf]
    %v158 = vld [vmem:[%s1 + $0x198] sm:$0xf]
    %v159 = vld [vmem:[%s1 + $0x19c] sm:$0xf]
    %v160 = vld [vmem:[%s1 + $0x1a0] sm:$0xf]
    %v161 = vld [vmem:[%s1 + $0x1a4] sm:$0xf]
    %v162 = vld [vmem:[%s1 + $0x1a8] sm:$0xf]
    %v163 = vld [vmem:[%s1 + $0x1ac] sm:$0xf]
    %v164 = vld [vmem:[%s1 + $0x1b0] sm:$0xf]
    %v165 = vld [vmem:[%s1 + $0x1b4] sm:$0xf]
    %v166 = vld [vmem:[%s1 + $0x1b8] sm:$0xf]
    %v167 = vld [vmem:[%s1 + $0x1bc] sm:$0xf]
    %v168 = vld [vmem:[%s1 + $0x1c0] sm:$0xf]
    %v169 = vld [vmem:[%s1 + $0x1c4] sm:$0xf]
    %v170 = vld [vmem:[%s1 + $0x1c8] sm:$0xf]
    %v171 = vld [vmem:[%s1 + $0x1cc] sm:$0xf]
    %v172 = vld [vmem:[%s1 + $0x1d0] sm:$0xf]
    %v173 = vld [vmem:[%s1 + $0x1d4] sm:$0xf]
    %v174 = vld [vmem:[%s1 + $0x1d8] sm:$0xf]
    %v175 = vld [vmem:[%s1 + $0x1dc] sm:$0xf]
    %v176 = vld [vmem:[%s1 + $0x1e0] sm:$0xf]
    %v177 = vld [vmem:[%s1 + $0x1e4] sm:$0xf]
    %v178 = vld [vmem:[%s1 + $0x1e8] sm:$0xf]
    %v179 = vld [vmem:[%s1 + $0x1ec] sm:$0xf]
    %v180 = vld [vmem:[%s1 + $0x1f0] sm:$0xf]
    %v181 = vld [vmem:[%s1 + $0x1f4] sm:$0xf]
    %v182 = vld [vmem:[%s1 + $0x1f8] sm:$0xf]
    %v183 = vld [vmem:[%s1 + $0x1fc] sm:$0xf]
    %v208 = vunpack.c.l.b16 %v32
    %v209 = vunpack.c.h.b16 %v32
    %v210 = vunpack.c.l.b16 %v33
    %v211 = vunpack.c.h.b16 %v33
    %v212 = vunpack.c.l.b16 %v34
    %v213 = vunpack.c.h.b16 %v34
    %v214 = vunpack.c.l.b16 %v35
    %v215 = vunpack.c.h.b16 %v35
    %v216 = vunpack.c.l.b16 %v36
    %v217 = vunpack.c.h.b16 %v36
    %v218 = vunpack.c.l.b16 %v37
    %v219 = vunpack.c.h.b16 %v37
    %v220 = vunpack.c.l.b16 %v38
    %v221 = vunpack.c.h.b16 %v38
    %v222 = vunpack.c.l.b16 %v39
    %v223 = vunpack.c.h.b16 %v39
    %v224 = vunpack.c.l.b16 %v40
    %v225 = vunpack.c.h.b16 %v40
    %v226 = vunpack.c.l.b16 %v41
    %v227 = vunpack.c.h.b16 %v41
    %v228 = vunpack.c.l.b16 %v42
    %v229 = vunpack.c.h.b16 %v42
    %v230 = vunpack.c.l.b16 %v43
    %v231 = vunpack.c.h.b16 %v43
    %v232 = vunpack.c.l.b16 %v44
    %v233 = vunpack.c.h.b16 %v44
    %v234 = vunpack.c.l.b16 %v45
    %v235 = vunpack.c.h.b16 %v45
    %v236 = vunpack.c.l.b16 %v46
    %v237 = vunpack.c.h.b16 %v46
    %v238 = vunpack.c.l.b16 %v47
    %v239 = vunpack.c.h.b16 %v47
    %v240 = vunpack.c.l.b16 %v48
    %v241 = vunpack.c.h.b16 %v48
    %v242 = vunpack.c.l.b16 %v49
    %v243 = vunpack.c.h.b16 %v49
    %v244 = vunpack.c.l.b16 %v50
    %v245 = vunpack.c.h.b16 %v50
    %v246 = vunpack.c.l.b16 %v51
    %v247 = vunpack.c.h.b16 %v51
    %v248 = vunpack.c.l.b16 %v52
    %v249 = vunpack.c.h.b16 %v52
    %v250 = vunpack.c.l.b16 %v53
    %v251 = vunpack.c.h.b16 %v53
    %v252 = vunpack.c.l.b16 %v54
    %v253 = vunpack.c.h.b16 %v54
    %v254 = vunpack.c.l.b16 %v55
    %v255 = vunpack.c.h.b16 %v55
    %v256 = vpack.c.b16 %v216, %v208
    %v257 = vpack.c.b16 %v217, %v209
    %v258 = vpack.c.b16 %v218, %v210
    %v259 = vpack.c.b16 %v219, %v211
    %v260 = vpack.c.b16 %v220, %v212
    %v261 = vpack.c.b16 %v221, %v213
    %v262 = vpack.c.b16 %v222, %v214
    %v263 = vpack.c.b16 %v223, %v215
    %v264 = vpack.c.b16 %v232, %v224
    %v265 = vpack.c.b16 %v233, %v225
    %v266 = vpack.c.b16 %v234, %v226
    %v267 = vpack.c.b16 %v235, %v227
    %v268 = vpack.c.b16 %v236, %v228
    %v269 = vpack.c.b16 %v237, %v229
    %v270 = vpack.c.b16 %v238, %v230
    %v271 = vpack.c.b16 %v239, %v231
    %v272 = vpack.c.b16 %v248, %v240
    %v273 = vpack.c.b16 %v249, %v241
    %v274 = vpack.c.b16 %v250, %v242
    %v275 = vpack.c.b16 %v251, %v243
    %v276 = vpack.c.b16 %v252, %v244
    %v277 = vpack.c.b16 %v253, %v245
    %v278 = vpack.c.b16 %v254, %v246
    %v279 = vpack.c.b16 %v255, %v247
    %v432 = vunpack.c.l.b16 %v56
    %v433 = vunpack.c.l.b16 %v57
    %v434 = vunpack.c.l.b16 %v58
    %v435 = vunpack.c.l.b16 %v59
    %v436 = vunpack.c.l.b16 %v60
    %v437 = vunpack.c.l.b16 %v61
    %v438 = vunpack.c.l.b16 %v62
    %v439 = vunpack.c.l.b16 %v63
    %v440 = vunpack.c.l.b16 %v64
    %v441 = vunpack.c.l.b16 %v65
    %v442 = vunpack.c.l.b16 %v66
    %v443 = vunpack.c.l.b16 %v67
    %v444 = vunpack.c.l.b16 %v68
    %v445 = vunpack.c.l.b16 %v69
    %v446 = vunpack.c.l.b16 %v70
    %v447 = vunpack.c.l.b16 %v71
    %v448 = vunpack.c.l.b16 %v72
    %v449 = vunpack.c.l.b16 %v73
    %v450 = vunpack.c.l.b16 %v74
    %v451 = vunpack.c.l.b16 %v75
    %v452 = vunpack.c.l.b16 %v76
    %v453 = vunpack.c.l.b16 %v77
    %v454 = vunpack.c.l.b16 %v78
    %v455 = vunpack.c.l.b16 %v79
    %v456 = vunpack.c.l.b16 %v80
    %v457 = vunpack.c.l.b16 %v81
    %v458 = vunpack.c.l.b16 %v82
    %v459 = vunpack.c.l.b16 %v83
    %v460 = vunpack.c.l.b16 %v84
    %v461 = vunpack.c.l.b16 %v85
    %v462 = vunpack.c.l.b16 %v86
    %v463 = vunpack.c.l.b16 %v87
    %v464 = vunpack.c.l.b16 %v88
    %v465 = vunpack.c.l.b16 %v89
    %v466 = vunpack.c.l.b16 %v90
    %v467 = vunpack.c.l.b16 %v91
    %v468 = vunpack.c.l.b16 %v92
    %v469 = vunpack.c.l.b16 %v93
    %v470 = vunpack.c.l.b16 %v94
    %v471 = vunpack.c.l.b16 %v95
    %v472 = vunpack.c.l.b16 %v96
    %v473 = vunpack.c.l.b16 %v97
    %v474 = vunpack.c.l.b16 %v98
    %v475 = vunpack.c.l.b16 %v99
    %v476 = vunpack.c.l.b16 %v100
    %v477 = vunpack.c.l.b16 %v101
    %v478 = vunpack.c.l.b16 %v102
    %v479 = vunpack.c.l.b16 %v103
    %v480 = vunpack.c.l.b16 %v104
    %v481 = vunpack.c.l.b16 %v105
    %v482 = vunpack.c.l.b16 %v106
    %v483 = vunpack.c.l.b16 %v107
    %v484 = vunpack.c.l.b16 %v108
    %v485 = vunpack.c.l.b16 %v109
    %v486 = vunpack.c.l.b16 %v110
    %v487 = vunpack.c.l.b16 %v111
    %v488 = vunpack.c.l.b16 %v112
    %v489 = vunpack.c.l.b16 %v113
    %v490 = vunpack.c.l.b16 %v114
    %v491 = vunpack.c.l.b16 %v115
    %v492 = vunpack.c.l.b16 %v116
    %v493 = vunpack.c.l.b16 %v117
    %v494 = vunpack.c.l.b16 %v118
    %v495 = vunpack.c.l.b16 %v119
    %v496 = vunpack.c.l.b16 %v120
    %v497 = vunpack.c.l.b16 %v121
    %v498 = vunpack.c.l.b16 %v122
    %v499 = vunpack.c.l.b16 %v123
    %v500 = vunpack.c.l.b16 %v124
    %v501 = vunpack.c.l.b16 %v125
    %v502 = vunpack.c.l.b16 %v126
    %v503 = vunpack.c.l.b16 %v127
    %v504 = vunpack.c.l.b16 %v128
    %v505 = vunpack.c.l.b16 %v129
    %v506 = vunpack.c.l.b16 %v130
    %v507 = vunpack.c.l.b16 %v131
    %v508 = vunpack.c.l.b16 %v132
    %v509 = vunpack.c.l.b16 %v133
    %v510 = vunpack.c.l.b16 %v134
    %v511 = vunpack.c.l.b16 %v135
    %v512 = vunpack.c.l.b16 %v136
    %v513 = vunpack.c.l.b16 %v137
    %v514 = vunpack.c.l.b16 %v138
    %v515 = vunpack.c.l.b16 %v139
    %v516 = vunpack.c.l.b16 %v140
    %v517 = vunpack.c.l.b16 %v141
    %v518 = vunpack.c.l.b16 %v142
    %v519 = vunpack.c.l.b16 %v143
    %v520 = vunpack.c.l.b16 %v144
    %v521 = vunpack.c.l.b16 %v145
    %v522 = vunpack.c.l.b16 %v146
    %v523 = vunpack.c.l.b16 %v147
    %v524 = vunpack.c.l.b16 %v148
    %v525 = vunpack.c.l.b16 %v149
    %v526 = vunpack.c.l.b16 %v150
    %v527 = vunpack.c.l.b16 %v151
    %v528 = vunpack.c.l.b16 %v152
    %v529 = vunpack.c.l.b16 %v153
    %v530 = vunpack.c.l.b16 %v154
    %v531 = vunpack.c.l.b16 %v155
    %v532 = vunpack.c.l.b16 %v156
    %v533 = vunpack.c.l.b16 %v157
    %v534 = vunpack.c.l.b16 %v158
    %v535 = vunpack.c.l.b16 %v159
    %v536 = vunpack.c.l.b16 %v160
    %v537 = vunpack.c.l.b16 %v161
    %v538 = vunpack.c.l.b16 %v162
    %v539 = vunpack.c.l.b16 %v163
    %v540 = vunpack.c.l.b16 %v164
    %v541 = vunpack.c.l.b16 %v165
    %v542 = vunpack.c.l.b16 %v166
    %v543 = vunpack.c.l.b16 %v167
    %v544 = vunpack.c.l.b16 %v168
    %v545 = vunpack.c.l.b16 %v169
    %v546 = vunpack.c.l.b16 %v170
    %v547 = vunpack.c.l.b16 %v171
    %v548 = vunpack.c.l.b16 %v172
    %v549 = vunpack.c.l.b16 %v173
    %v550 = vunpack.c.l.b16 %v174
    %v551 = vunpack.c.l.b16 %v175
    %v552 = vunpack.c.l.b16 %v176
    %v553 = vunpack.c.l.b16 %v177
    %v554 = vunpack.c.l.b16 %v178
    %v555 = vunpack.c.l.b16 %v179
    %v556 = vunpack.c.l.b16 %v180
    %v557 = vunpack.c.l.b16 %v181
    %v558 = vunpack.c.l.b16 %v182
    %v559 = vunpack.c.l.b16 %v183
    %v560 = vpack.c.b16 %v433, %v432
    %v561 = vpack.c.b16 %v435, %v434
    %v562 = vpack.c.b16 %v437, %v436
    %v563 = vpack.c.b16 %v439, %v438
    %v564 = vpack.c.b16 %v441, %v440
    %v565 = vpack.c.b16 %v443, %v442
    %v566 = vpack.c.b16 %v445, %v444
    %v567 = vpack.c.b16 %v447, %v446
    %v568 = vpack.c.b16 %v449, %v448
    %v569 = vpack.c.b16 %v451, %v450
    %v570 = vpack.c.b16 %v453, %v452
    %v571 = vpack.c.b16 %v455, %v454
    %v572 = vpack.c.b16 %v457, %v456
    %v573 = vpack.c.b16 %v459, %v458
    %v574 = vpack.c.b16 %v461, %v460
    %v575 = vpack.c.b16 %v463, %v462
    %v576 = vpack.c.b16 %v465, %v464
    %v577 = vpack.c.b16 %v467, %v466
    %v578 = vpack.c.b16 %v469, %v468
    %v579 = vpack.c.b16 %v471, %v470
    %v580 = vpack.c.b16 %v473, %v472
    %v581 = vpack.c.b16 %v475, %v474
    %v582 = vpack.c.b16 %v477, %v476
    %v583 = vpack.c.b16 %v479, %v478
    %v584 = vpack.c.b16 %v481, %v480
    %v585 = vpack.c.b16 %v483, %v482
    %v586 = vpack.c.b16 %v485, %v484
    %v587 = vpack.c.b16 %v487, %v486
    %v588 = vpack.c.b16 %v489, %v488
    %v589 = vpack.c.b16 %v491, %v490
    %v590 = vpack.c.b16 %v493, %v492
    %v591 = vpack.c.b16 %v495, %v494
    %v592 = vpack.c.b16 %v497, %v496
    %v593 = vpack.c.b16 %v499, %v498
    %v594 = vpack.c.b16 %v501, %v500
    %v595 = vpack.c.b16 %v503, %v502
    %v596 = vpack.c.b16 %v505, %v504
    %v597 = vpack.c.b16 %v507, %v506
    %v598 = vpack.c.b16 %v509, %v508
    %v599 = vpack.c.b16 %v511, %v510
    %v600 = vpack.c.b16 %v513, %v512
    %v601 = vpack.c.b16 %v515, %v514
    %v602 = vpack.c.b16 %v517, %v516
    %v603 = vpack.c.b16 %v519, %v518
    %v604 = vpack.c.b16 %v521, %v520
    %v605 = vpack.c.b16 %v523, %v522
    %v606 = vpack.c.b16 %v525, %v524
    %v607 = vpack.c.b16 %v527, %v526
    %v608 = vpack.c.b16 %v529, %v528
    %v609 = vpack.c.b16 %v531, %v530
    %v610 = vpack.c.b16 %v533, %v532
    %v611 = vpack.c.b16 %v535, %v534
    %v612 = vpack.c.b16 %v537, %v536
    %v613 = vpack.c.b16 %v539, %v538
    %v614 = vpack.c.b16 %v541, %v540
    %v615 = vpack.c.b16 %v543, %v542
    %v616 = vpack.c.b16 %v545, %v544
    %v617 = vpack.c.b16 %v547, %v546
    %v618 = vpack.c.b16 %v549, %v548
    %v619 = vpack.c.b16 %v551, %v550
    %v620 = vpack.c.b16 %v553, %v552
    %v621 = vpack.c.b16 %v555, %v554
    %v622 = vpack.c.b16 %v557, %v556
    %v623 = vpack.c.b16 %v559, %v558
    %688 = vmatprep.subr.bf16.mxu0 0
    %689 = vmatpush1.bf16.msra.mxu0 %v560
    %690 = vmatprep.subr.bf16.mxu0 0
    %691 = vmatpush1.bf16.msra.mxu0 %v561
    %692 = vmatprep.subr.bf16.mxu0 0
    %693 = vmatpush1.bf16.msra.mxu0 %v562
    %694 = vmatprep.subr.bf16.mxu0 0
    %695 = vmatpush1.bf16.msra.mxu0 %v563
    %696 = vmatprep.subr.bf16.mxu0 0
    %697 = vmatpush1.bf16.msra.mxu0 %v564
    %698 = vmatprep.subr.bf16.mxu0 0
    %699 = vmatpush1.bf16.msra.mxu0 %v565
    %700 = vmatprep.subr.bf16.mxu0 0
    %701 = vmatpush1.bf16.msra.mxu0 %v566
    %702 = vmatprep.subr.bf16.mxu0 0
    %703 = vmatpush1.bf16.msra.mxu0 %v567
    %704 = vmatprep.subr.bf16.mxu0 0
    %705 = vmatpush1.bf16.msra.mxu0 %v568
    %706 = vmatprep.subr.bf16.mxu0 0
    %707 = vmatpush1.bf16.msra.mxu0 %v569
    %708 = vmatprep.subr.bf16.mxu0 0
    %709 = vmatpush1.bf16.msra.mxu0 %v570
    %710 = vmatprep.subr.bf16.mxu0 0
    %711 = vmatpush1.bf16.msra.mxu0 %v571
    %712 = vmatprep.subr.bf16.mxu0 0
    %713 = vmatpush1.bf16.msra.mxu0 %v572
    %714 = vmatprep.subr.bf16.mxu0 0
    %715 = vmatpush1.bf16.msra.mxu0 %v573
    %716 = vmatprep.subr.bf16.mxu0 0
    %717 = vmatpush1.bf16.msra.mxu0 %v574
    %718 = vmatprep.subr.bf16.mxu0 0
    %719 = vmatpush1.bf16.msra.mxu0 %v575
    %720 = vmatprep.mubr.bf16.mxu0 %v257
    %721 = vmatmul.mubr.bf16.gmra.mrb[0].mxu0 %v256
    %v722 = vpop.f32.mrb[0].mxu0
    %v723 = vadd.f32 0.0, %v722
    %v724 = vpop.f32.mrb[0].mxu0
    %v725 = vpop.f32.mrb[0].mxu0
    %v726 = vadd.f32 0.0, %v725
    %v727 = vpop.f32.mrb[0].mxu0
    %728 = vmatprep.mubr.bf16.mxu0 %v265
    %729 = vmatmul.mubr.bf16.gmra.mrb[0].mxu0 %v264
    %v730 = vpop.f32.mrb[0].mxu0
    %v731 = vadd.f32 0.0, %v730
    %v732 = vpop.f32.mrb[0].mxu0
    %v733 = vpop.f32.mrb[0].mxu0
    %v734 = vadd.f32 0.0, %v733
    %v735 = vpop.f32.mrb[0].mxu0
    %736 = vmatprep.mubr.bf16.mxu0 %v273
    %737 = vmatmul.mubr.bf16.gmra.mrb[0].mxu0 %v272
    %v738 = vpop.f32.mrb[0].mxu0
    %v739 = vadd.f32 0.0, %v738
    %v740 = vpop.f32.mrb[0].mxu0
    %v741 = vpop.f32.mrb[0].mxu0
    %v742 = vadd.f32 0.0, %v741
    %v743 = vpop.f32.mrb[0].mxu0
    %744 = vdwg.mxu0
    %745 = vmatprep.subr.bf16.mxu0 0
    %746 = vmatpush1.bf16.msra.mxu0 %v576
    %747 = vmatprep.subr.bf16.mxu0 0
    %748 = vmatpush1.bf16.msra.mxu0 %v577
    %749 = vmatprep.subr.bf16.mxu0 0
    %750 = vmatpush1.bf16.msra.mxu0 %v578
    %751 = vmatprep.subr.bf16.mxu0 0
    %752 = vmatpush1.bf16.msra.mxu0 %v579
    %753 = vmatprep.subr.bf16.mxu0 0
    %754 = vmatpush1.bf16.msra.mxu0 %v580
    %755 = vmatprep.subr.bf16.mxu0 0
    %756 = vmatpush1.bf16.msra.mxu0 %v581
    %757 = vmatprep.subr.bf16.mxu0 0
    %758 = vmatpush1.bf16.msra.mxu0 %v582
    %759 = vmatprep.subr.bf16.mxu0 0
    %760 = vmatpush1.bf16.msra.mxu0 %v583
    %761 = vmatprep.subr.bf16.mxu0 0
    %762 = vmatpush1.bf16.msra.mxu0 %v584
    %763 = vmatprep.subr.bf16.mxu0 0
    %764 = vmatpush1.bf16.msra.mxu0 %v585
    %765 = vmatprep.subr.bf16.mxu0 0
    %766 = vmatpush1.bf16.msra.mxu0 %v586
    %767 = vmatprep.subr.bf16.mxu0 0
    %768 = vmatpush1.bf16.msra.mxu0 %v587
    %769 = vmatprep.subr.bf16.mxu0 0
    %770 = vmatpush1.bf16.msra.mxu0 %v588
    %771 = vmatprep.subr.bf16.mxu0 0
    %772 = vmatpush1.bf16.msra.mxu0 %v589
    %773 = vmatprep.subr.bf16.mxu0 0
    %774 = vmatpush1.bf16.msra.mxu0 %v590
    %775 = vmatprep.subr.bf16.mxu0 0
    %776 = vmatpush1.bf16.msra.mxu0 %v591
    %777 = vmatprep.mubr.bf16.mxu0 %v259
    %778 = vmatmul.mubr.bf16.gmra.mrb[0].mxu0 %v258
    %v779 = vpop.f32.mrb[0].mxu0
    %v780 = vadd.f32 %v723, %v779
    %v781 = vpop.f32.mrb[0].mxu0
    %v782 = vpop.f32.mrb[0].mxu0
    %v783 = vadd.f32 %v726, %v782
    %v784 = vpop.f32.mrb[0].mxu0
    %785 = vmatprep.mubr.bf16.mxu0 %v267
    %786 = vmatmul.mubr.bf16.gmra.mrb[0].mxu0 %v266
    %v787 = vpop.f32.mrb[0].mxu0
    %v788 = vadd.f32 %v731, %v787
    %v789 = vpop.f32.mrb[0].mxu0
    %v790 = vpop.f32.mrb[0].mxu0
    %v791 = vadd.f32 %v734, %v790
    %v792 = vpop.f32.mrb[0].mxu0
    %793 = vmatprep.mubr.bf16.mxu0 %v275
    %794 = vmatmul.mubr.bf16.gmra.mrb[0].mxu0 %v274
    %v795 = vpop.f32.mrb[0].mxu0
    %v796 = vadd.f32 %v739, %v795
    %v797 = vpop.f32.mrb[0].mxu0
    %v798 = vpop.f32.mrb[0].mxu0
    %v799 = vadd.f32 %v742, %v798
    %v800 = vpop.f32.mrb[0].mxu0
    %801 = vdwg.mxu0
    %802 = vmatprep.subr.bf16.mxu0 0
    %803 = vmatpush1.bf16.msra.mxu0 %v592
    %804 = vmatprep.subr.bf16.mxu0 0
    %805 = vmatpush1.bf16.msra.mxu0 %v593
    %806 = vmatprep.subr.bf16.mxu0 0
    %807 = vmatpush1.bf16.msra.mxu0 %v594
    %808 = vmatprep.subr.bf16.mxu0 0
    %809 = vmatpush1.bf16.msra.mxu0 %v595
    %810 = vmatprep.subr.bf16.mxu0 0
    %811 = vmatpush1.bf16.msra.mxu0 %v596
    %812 = vmatprep.subr.bf16.mxu0 0
    %813 = vmatpush1.bf16.msra.mxu0 %v597
    %814 = vmatprep.subr.bf16.mxu0 0
    %815 = vmatpush1.bf16.msra.mxu0 %v598
    %816 = vmatprep.subr.bf16.mxu0 0
    %817 = vmatpush1.bf16.msra.mxu0 %v599
    %818 = vmatprep.subr.bf16.mxu0 0
    %819 = vmatpush1.bf16.msra.mxu0 %v600
    %820 = vmatprep.subr.bf16.mxu0 0
    %821 = vmatpush1.bf16.msra.mxu0 %v601
    %822 = vmatprep.subr.bf16.mxu0 0
    %823 = vmatpush1.bf16.msra.mxu0 %v602
    %824 = vmatprep.subr.bf16.mxu0 0
    %825 = vmatpush1.bf16.msra.mxu0 %v603
    %826 = vmatprep.subr.bf16.mxu0 0
    %827 = vmatpush1.bf16.msra.mxu0 %v604
    %828 = vmatprep.subr.bf16.mxu0 0
    %829 = vmatpush1.bf16.msra.mxu0 %v605
    %830 = vmatprep.subr.bf16.mxu0 0
    %831 = vmatpush1.bf16.msra.mxu0 %v606
    %832 = vmatprep.subr.bf16.mxu0 0
    %833 = vmatpush1.bf16.msra.mxu0 %v607
    %834 = vmatprep.mubr.bf16.mxu0 %v261
    %835 = vmatmul.mubr.bf16.gmra.mrb[0].mxu0 %v260
    %v836 = vpop.f32.mrb[0].mxu0
    %v837 = vadd.f32 %v780, %v836
    %v838 = vpop.f32.mrb[0].mxu0
    %v839 = vpop.f32.mrb[0].mxu0
    %v840 = vadd.f32 %v783, %v839
    %v841 = vpop.f32.mrb[0].mxu0
    %842 = vmatprep.mubr.bf16.mxu0 %v269
    %843 = vmatmul.mubr.bf16.gmra.mrb[0].mxu0 %v268
    %v844 = vpop.f32.mrb[0].mxu0
    %v845 = vadd.f32 %v788, %v844
    %v846 = vpop.f32.mrb[0].mxu0
    %v847 = vpop.f32.mrb[0].mxu0
    %v848 = vadd.f32 %v791, %v847
    %v849 = vpop.f32.mrb[0].mxu0
    %850 = vmatprep.mubr.bf16.mxu0 %v277
    %851 = vmatmul.mubr.bf16.gmra.mrb[0].mxu0 %v276
    %v852 = vpop.f32.mrb[0].mxu0
    %v853 = vadd.f32 %v796, %v852
    %v854 = vpop.f32.mrb[0].mxu0
    %v855 = vpop.f32.mrb[0].mxu0
    %v856 = vadd.f32 %v799, %v855
    %v857 = vpop.f32.mrb[0].mxu0
    %858 = vdwg.mxu0
    %859 = vmatprep.subr.bf16.mxu0 0
    %860 = vmatpush1.bf16.msra.mxu0 %v608
    %861 = vmatprep.subr.bf16.mxu0 0
    %862 = vmatpush1.bf16.msra.mxu0 %v609
    %863 = vmatprep.subr.bf16.mxu0 0
    %864 = vmatpush1.bf16.msra.mxu0 %v610
    %865 = vmatprep.subr.bf16.mxu0 0
    %866 = vmatpush1.bf16.msra.mxu0 %v611
    %867 = vmatprep.subr.bf16.mxu0 0
    %868 = vmatpush1.bf16.msra.mxu0 %v612
    %869 = vmatprep.subr.bf16.mxu0 0
    %870 = vmatpush1.bf16.msra.mxu0 %v613
    %871 = vmatprep.subr.bf16.mxu0 0
    %872 = vmatpush1.bf16.msra.mxu0 %v614
    %873 = vmatprep.subr.bf16.mxu0 0
    %874 = vmatpush1.bf16.msra.mxu0 %v615
    %875 = vmatprep.subr.bf16.mxu0 0
    %876 = vmatpush1.bf16.msra.mxu0 %v616
    %877 = vmatprep.subr.bf16.mxu0 0
    %878 = vmatpush1.bf16.msra.mxu0 %v617
    %879 = vmatprep.subr.bf16.mxu0 0
    %880 = vmatpush1.bf16.msra.mxu0 %v618
    %881 = vmatprep.subr.bf16.mxu0 0
    %882 = vmatpush1.bf16.msra.mxu0 %v619
    %883 = vmatprep.subr.bf16.mxu0 0
    %884 = vmatpush1.bf16.msra.mxu0 %v620
    %885 = vmatprep.subr.bf16.mxu0 0
    %886 = vmatpush1.bf16.msra.mxu0 %v621
    %887 = vmatprep.subr.bf16.mxu0 0
    %888 = vmatpush1.bf16.msra.mxu0 %v622
    %889 = vmatprep.subr.bf16.mxu0 0
    %890 = vmatpush1.bf16.msra.mxu0 %v623
    %891 = vmatprep.mubr.bf16.mxu0 %v263
    %892 = vmatmul.mubr.bf16.gmra.mrb[0].mxu0 %v262
    %v893 = vpop.f32.mrb[0].mxu0
    %v894 = vadd.f32 %v837, %v893
    %v895 = vpop.f32.mrb[0].mxu0
    %v896 = vpop.f32.mrb[0].mxu0
    %v897 = vadd.f32 %v840, %v896
    %v898 = vpop.f32.mrb[0].mxu0
    %899 = vmatprep.mubr.bf16.mxu0 %v271
    %900 = vmatmul.mubr.bf16.gmra.mrb[0].mxu0 %v270
    %v901 = vpop.f32.mrb[0].mxu0
    %v902 = vadd.f32 %v845, %v901
    %v903 = vpop.f32.mrb[0].mxu0
    %v904 = vpop.f32.mrb[0].mxu0
    %v905 = vadd.f32 %v848, %v904
    %v906 = vpop.f32.mrb[0].mxu0
    %907 = vmatprep.mubr.bf16.mxu0 %v279
    %908 = vmatmul.mubr.bf16.gmra.mrb[0].mxu0 %v278
    %v909 = vpop.f32.mrb[0].mxu0
    %v910 = vadd.f32 %v853, %v909
    %v911 = vpop.f32.mrb[0].mxu0
    %v912 = vpop.f32.mrb[0].mxu0
    %v913 = vadd.f32 %v856, %v912
    %v914 = vpop.f32.mrb[0].mxu0
    %915 = vdwg.mxu0
    %v916 = vadd.f32 %v26, %v894
    %v917 = vadd.f32 %v27, %v897
    %v918 = vadd.f32 %v28, %v902
    %v919 = vadd.f32 %v29, %v905
    %v920 = vadd.f32 %v30, %v910
    %v921 = vadd.f32 %v31, %v913
    %922 = vst [vmem:[#allocation2] sm:$0xff] %v916
    %923 = vst [vmem:[#allocation2 + $0x8] sm:$0xff] %v917
    %924 = vst [vmem:[#allocation2 + $0x10] sm:$0xff] %v918
    %925 = vst [vmem:[#allocation2 + $0x18] sm:$0xff] %v919
    %926 = vst [vmem:[#allocation2 + $0x20] sm:$0xff] %v920
    %927 = vst [vmem:[#allocation2 + $0x28] sm:$0xff] %v921
    // Predicated region
    $region14: #{_forward_train_impl.1} parent=1 // pred_check
      %p928 = pneg %p16
    $region15: #{_forward_train_impl.1} parent=1 // pred_check_branch
      %930 = sbr.rel (%p928) target = $region17
    $region16: #{_forward_train_impl.1} parent=1 // pred_region
      %v931 = vld [vmem:[#allocation2] sm:$0xff]
      %v932 = vld [vmem:[#allocation2 + $0x8] sm:$0xff]
      %v933 = vld [vmem:[#allocation2 + $0x10] sm:$0xff]
      %v934 = vld [vmem:[#allocation2 + $0x18] sm:$0xff]
      %v935 = vld [vmem:[#allocation2 + $0x20] sm:$0xff]
      %v936 = vld [vmem:[#allocation2 + $0x28] sm:$0xff]
      %v937 = vsub.f32 %v931, %v933
      %v938 = vsub.f32 %v932, %v934
      %v939 = vmul.f32 %v937, %v937
      %v940 = vmul.f32 %v938, %v938
      %941 = vadd.xlane.f32.xlu0 %v939
      %v942 = vpop.xlane.xlu0 %941
      %943 = vadd.xlane.f32.xlu0 %v940
      %v944 = vpop.xlane.xlu0 %943
      %v945 = vsub.f32 %v931, %v935
      %v946 = vsub.f32 %v932, %v936
      %v947 = vmul.f32 %v945, %v945
      %v948 = vmul.f32 %v946, %v946
      %949 = vadd.xlane.f32.xlu0 %v947
      %v950 = vpop.xlane.xlu0 %949
      %951 = vadd.xlane.f32.xlu0 %v948
      %v952 = vpop.xlane.xlu0 %951
      %v953 = vsub.f32 %v942, %v950
      %v954 = vsub.f32 %v944, %v952
      %v955 = vadd.f32 %v953, 0.2
      %v956 = vadd.f32 %v954, 0.2
      %v957 = vmax.f32 %v955, 0.0
      %v958 = vmax.f32 %v956, 0.0
      %v959 = vlaneseq
      %v960 = vshrl.u32 %v959, 7
      %v961 = vadd.s32 %v960, 8
      %vm962 = vcmp.lt.s32.totalorder %v960, 2
      %vm963 = vcmp.lt.s32.totalorder %v961, 2
      %v964 = vsel %vm962, %v957, 0.0
      %v965 = vsel %vm963, %v958, 0.0
      %vm966 = vcmask 7168
      %v967 = vsel %vm966, %v964, 0.0
      %v968 = vsel %vm966, %v965, 0.0
      %v969 = vadd.f32 %v967, %v968
      %970 = vadd.xlane.f32.xlu0 %v969
      %v971 = vpop.xlane.xlu0 %970
      %v972 = vrot.slane %v971, 4
      %v973 = vadd.f32 %v971, %v972
      %v974 = vrot.slane %v973, 2
      %v975 = vadd.f32 %v973, %v974
      %v976 = vrot.slane %v975, 1
      %v977 = vadd.f32 %v975, %v976
      %s978 = vtos %v977
      %v979 = vrcp.pop 2.0
      %s980 = vtos %v979
      %s981 = smul.f32 %s978, %s980
      %s982 = scalar_lea.smem [#allocation5], 0
      %983 = sst [smem:[%s982]] %s981
    $region17: #{_forward_train_impl.1} parent=1 // pred_fallthru
      _
    // Predicated region
    $region18: #{_forward_train_impl.1} parent=1 // pred_check
      _
    $region19: #{_forward_train_impl.1} parent=1 // pred_check_branch
      %985 = sbr.rel (0) target = $region21
    $region20: #{_forward_train_impl.1} parent=1 // pred_region
      %s987 = ssub.s32 768, 768
      %988 = vsyncadd [#allocation3], %s987
      %s989 = sshll.u32 [#allocation2], 4
      %s990 = int_to_ptr.vmem [resolvable:$true] %s989
      %995 = dma.vmem_to_hbm [thread:$0]  %s990, 768, %s2, [#allocation3], 128, 128, 8
    $region21: #{_forward_train_impl.1} parent=1 // pred_fallthru
      _
    // Predicated region
    $region22: #{_forward_train_impl.1} parent=1 // pred_check
      _
    $region23: #{_forward_train_impl.1} parent=1 // pred_check_branch
      %997 = sbr.rel (0) target = $region25
    $region24: #{_forward_train_impl.1} parent=1 // pred_region
      %s999 = ssub.s32 16, 16
      %1000 = vsyncadd [#allocation4], %s999
      %1003 = dma.smem_to_hbm [#allocation5], 16, %s3, [#allocation4]
    $region25: #{_forward_train_impl.1} parent=1 // pred_fallthru
      _
    // Predicated region
    $region26: #{_forward_train_impl.1} parent=1 // pred_check
      _
    $region27: #{_forward_train_impl.1} parent=1 // pred_check_branch
      %1005 = sbr.rel (0) target = $region29
    $region28: #{_forward_train_impl.1} parent=1 // pred_region
      %1006 = dma.done [#allocation3], 768
    $region29: #{_forward_train_impl.1} parent=1 // pred_fallthru
      _
    // Predicated region
    $region30: #{_forward_train_impl.1} parent=1 // pred_check
      _
    $region31: #{_forward_train_impl.1} parent=1 // pred_check_branch
      %1008 = sbr.rel (0) target = $region33
    $region32: #{_forward_train_impl.1} parent=1 // pred_region
      %1009 = dma.done [#allocation4], 16
    $region33: #{_forward_train_impl.1} parent=1 // pred_fallthru
      _
    %1010 = sfence
    %1011 = vsyncpa [#allocation3], 1
    %1012 = vsyncpa [#allocation4], 1

</llo_original>
